<compile_context>
chip_gen: v5e
topology: v5e:2x2
jax: 0.10.0
libtpu: 0.0.40
codegen_flags: <defaults>
</compile_context>

<pallas_src>
import functools

import jax
import jax.numpy as jnp
from jax import lax
from jax.experimental import pallas as pl
from jax.experimental.pallas import tpu as pltpu

EPS = 1e-5
_NEG = -1e30           # mask value for padded output lanes (avoids inf arithmetic)
_K_PAD = 896           # 784 -> 7 * 128
_H = 128               # hidden width
_NCLS = 10             # real output classes


def _round_up(n, m):
    return ((n + m - 1) // m) * m


# ---------------------------------------------------------------------------
# Kernel 1: per-tile  h = x @ W1 + b1  (bf16 MXU, f32 acc) + BN partial stats
# ---------------------------------------------------------------------------
def _fc1_stats_kernel(x_ref, w1_ref, b1_ref, h_ref, s_ref, ss_ref, *, tb, batch):
    i = pl.program_id(0)

    h = jnp.dot(x_ref[...], w1_ref[...],
                preferred_element_type=jnp.float32) + b1_ref[...]
    h_ref[...] = h

    # Mask rows beyond the true batch (zero-padded rows still produce h = b1,
    # which must not pollute the batch statistics).
    rows = lax.broadcasted_iota(jnp.int32, h.shape, 0) + i * tb
    hm = jnp.where(rows < batch, h, 0.0)

    s_ref[...] = jnp.sum(hm, axis=0, keepdims=True)[None]          # (1,1,128)
    ss_ref[...] = jnp.sum(hm * hm, axis=0, keepdims=True)[None]    # (1,1,128)


# ---------------------------------------------------------------------------
# Kernel 2: folded BN (one FMA) -> ReLU -> lane-dense FC2 -> ReLU -> log_softmax
# ---------------------------------------------------------------------------
def _bn_fc2_softmax_kernel(h_ref, scale_ref, shift_ref, w2_ref, b2_ref, o_ref):
    h = h_ref[...] * scale_ref[...] + shift_ref[...]      # BN as single FMA
    h = jnp.maximum(h, 0.0)                               # ReLU

    y = jnp.dot(h, w2_ref[...], preferred_element_type=jnp.float32) + b2_ref[...]
    y = jnp.maximum(y, 0.0)                               # ReLU

    # Padded lanes (>= 10) hold y = 0 -> must be excluded from the softmax.
    lanes = lax.broadcasted_iota(jnp.int32, y.shape, 1)
    y = jnp.where(lanes < _NCLS, y, _NEG)

    m = jnp.max(y, axis=1, keepdims=True)
    lse = m + jnp.log(jnp.sum(jnp.exp(y - m), axis=1, keepdims=True))
    o_ref[...] = y - lse


# ---------------------------------------------------------------------------
# Wrapper
# ---------------------------------------------------------------------------
def little_forward(x, w1, b1, gamma, beta, w2, b2, *, tile_b=512):
    """x: (B, 1, 28, 28) or (B, 784) float32. Returns (B, 10) float32."""
    xb = x.reshape(-1, 28 * 28).astype(jnp.float32)
    B = xb.shape[0]

    TB = min(tile_b, _round_up(B, 16))      # tile rows (bf16 sublane-friendly)
    B_pad = _round_up(B, TB)
    NT = B_pad // TB

    # Pad + cast the dominant operands to bf16 (halves HBM traffic on x).
    x_p = jnp.pad(xb.astype(jnp.bfloat16), ((0, B_pad - B), (0, _K_PAD - 784)))
    w1_p = jnp.pad(w1.astype(jnp.bfloat16), ((0, _K_PAD - 784), (0, 0)))
    b1_r = b1.reshape(1, _H).astype(jnp.float32)

    cp = pltpu.CompilerParams(
        dimension_semantics=("parallel",),
        vmem_limit_bytes=32 * 1024 * 1024,
    )

    k1 = functools.partial(_fc1_stats_kernel, tb=TB, batch=B)
    h, s, ss = pl.pallas_call(
        k1,
        grid=(NT,),
        in_specs=[
            pl.BlockSpec((TB, _K_PAD), lambda i: (i, 0)),     # x tile
            pl.BlockSpec((_K_PAD, _H), lambda i: (0, 0)),     # W1 (resident)
            pl.BlockSpec((1, _H), lambda i: (0, 0)),          # b1 (resident)
        ],
        out_specs=[
            pl.BlockSpec((TB, _H), lambda i: (i, 0)),         # h tile
            pl.BlockSpec((1, 1, _H), lambda i: (i, 0, 0)),    # per-tile sum
            pl.BlockSpec((1, 1, _H), lambda i: (i, 0, 0)),    # per-tile sumsq
        ],
        out_shape=[
            jax.ShapeDtypeStruct((B_pad, _H), jnp.float32),
            jax.ShapeDtypeStruct((NT, 1, _H), jnp.float32),
            jax.ShapeDtypeStruct((NT, 1, _H), jnp.float32),
        ],
        compiler_params=cp,
    )(x_p, w1_p, b1_r)

    # Finalize BatchNorm statistics (training mode: batch mean, biased variance)
    # and fold normalization + affine into a single per-feature scale / shift.
    total = jnp.sum(s, axis=(0, 1))          # (128,)
    totalsq = jnp.sum(ss, axis=(0, 1))       # (128,)
    mean = total / B
    var = totalsq / B - mean * mean
    scale = gamma * lax.rsqrt(var + EPS)
    shift = beta - mean * scale

    # Lane-dense second linear: pad (128,10)->(128,128), (10,)->(1,128).
    w2_p = jnp.zeros((_H, _H), jnp.float32).at[:, :_NCLS].set(w2)
    b2_p = jnp.zeros((1, _H), jnp.float32).at[:, :_NCLS].set(b2.reshape(1, _NCLS))

    out = pl.pallas_call(
        _bn_fc2_softmax_kernel,
        grid=(NT,),
        in_specs=[
            pl.BlockSpec((TB, _H), lambda i: (i, 0)),         # h tile
            pl.BlockSpec((1, _H), lambda i: (0, 0)),          # scale (resident)
            pl.BlockSpec((1, _H), lambda i: (0, 0)),          # shift (resident)
            pl.BlockSpec((_H, _H), lambda i: (0, 0)),         # W2 padded (resident)
            pl.BlockSpec((1, _H), lambda i: (0, 0)),          # b2 padded (resident)
        ],
        out_specs=pl.BlockSpec((TB, _H), lambda i: (i, 0)),
        out_shape=jax.ShapeDtypeStruct((B_pad, _H), jnp.float32),
        compiler_params=cp,
    )(h, scale.reshape(1, _H), shift.reshape(1, _H), w2_p, b2_p)

    return out[:B, :_NCLS]


def init_params(key):
    """Deterministic init mimicking PyTorch Linear default (uniform +/- 1/sqrt(fan_in))."""
    k1, k2, k3, k4 = jax.random.split(key, 4)
    lim1 = 1.0 / jnp.sqrt(784.0)
    lim2 = 1.0 / jnp.sqrt(128.0)
    w1 = jax.random.uniform(k1, (784, 128), jnp.float32, -lim1, lim1)
    b1 = jax.random.uniform(k2, (128,), jnp.float32, -lim1, lim1)
    w2 = jax.random.uniform(k3, (128, 10), jnp.float32, -lim2, lim2)
    b2 = jax.random.uniform(k4, (10,), jnp.float32, -lim2, lim2)
    gamma = jnp.ones((128,), jnp.float32)   # BatchNorm1d affine defaults
    beta = jnp.zeros((128,), jnp.float32)
    return w1, b1, gamma, beta, w2, b2


def _reference(x, w1, b1, gamma, beta, w2, b2):
    """Pure-JAX reference using the same bf16 first-matmul operands as the kernel."""
    xb = x.reshape(-1, 784).astype(jnp.float32)
    h = jnp.dot(xb.astype(jnp.bfloat16), w1.astype(jnp.bfloat16),
                preferred_element_type=jnp.float32) + b1
    mean = h.mean(0, keepdims=True)
    var = ((h - mean) ** 2).mean(0, keepdims=True)
    h = (h - mean) * lax.rsqrt(var + EPS) * gamma + beta
    h = jnp.maximum(h, 0.0)
    y = jnp.dot(h, w2, precision=jax.lax.Precision.HIGHEST) + b2
    y = jnp.maximum(y, 0.0)
    return jax.nn.log_softmax(y, axis=1)


if __name__ == "__main__":
    key = jax.random.PRNGKey(0)
    kx, kp = jax.random.split(key)
    B = 8
    x = jax.random.normal(kx, (B, 1, 28, 28), jnp.float32)
    params = init_params(kp)

    out = little_forward(x, *params)
    out = jax.block_until_ready(out)

    ref = _reference(x, *params)
    assert out.shape == (B, 10)
    assert jnp.allclose(out, ref, atol=2e-3, rtol=2e-3), "mismatch vs pure-JAX reference"
    print("KERNEL_OK")
</pallas_src>

<mosaic_0001>
module attributes {stable_mosaic.version = 11 : i64} {
  func.func @_fc1_stats_kernel(%arg0: i32, %arg1: memref<16x896xbf16, #tpu.memory_space<vmem>>, %arg2: memref<896x128xbf16, #tpu.memory_space<vmem>>, %arg3: memref<1x128xf32, #tpu.memory_space<vmem>>, %arg4: memref<16x128xf32, #tpu.memory_space<vmem>>, %arg5: memref<1x1x128xf32, #tpu.memory_space<vmem>>, %arg6: memref<1x1x128xf32, #tpu.memory_space<vmem>>) attributes {dimension_semantics = [#tpu.dimension_semantics<parallel>], iteration_bounds = array<i64: 1>, scalar_prefetch = 0 : i64, scratch_operands = 0 : i64, tpu.core_type = #tpu.core_type<tc>, window_params = [{transform_indices = @transform_0, window_bounds = array<i64: 16, 896>}, {pipeline_mode = #tpu.pipeline_mode<synchronous>, transform_indices = @transform_1, window_bounds = array<i64: 896, 128>}, {pipeline_mode = #tpu.pipeline_mode<synchronous>, transform_indices = @transform_2, window_bounds = array<i64: 1, 128>}, {transform_indices = @transform_3, window_bounds = array<i64: 16, 128>}, {transform_indices = @transform_4, window_bounds = array<i64: 1, 1, 128>}, {transform_indices = @transform_5, window_bounds = array<i64: 1, 1, 128>}]} {
    %c0 = arith.constant 0 : index
    %c0_0 = arith.constant 0 : index
    %0 = vector.load %arg1[%c0, %c0_0] : memref<16x896xbf16, #tpu.memory_space<vmem>>, vector<16x896xbf16>
    %c0_1 = arith.constant 0 : index
    %c0_2 = arith.constant 0 : index
    %1 = vector.load %arg2[%c0_1, %c0_2] : memref<896x128xbf16, #tpu.memory_space<vmem>>, vector<896x128xbf16>
    %cst = arith.constant dense<0.000000e+00> : vector<16x128xf32>
    %2 = tpu.matmul %0, %1, %cst {dimension_numbers = #tpu.dot_dimension_numbers<[1], [0], [0], [1], [0, 0, 1, 1], [], []>} : vector<16x896xbf16>, vector<896x128xbf16>, vector<16x128xf32> -> vector<16x128xf32>
    %c0_3 = arith.constant 0 : index
    %c0_4 = arith.constant 0 : index
    %3 = vector.load %arg3[%c0_3, %c0_4] : memref<1x128xf32, #tpu.memory_space<vmem>>, vector<1x128xf32>
    %4 = vector.broadcast %3 : vector<1x128xf32> to vector<16x128xf32>
    %5 = arith.addf %2, %4 : vector<16x128xf32>
    %c0_5 = arith.constant 0 : index
    %c0_6 = arith.constant 0 : index
    %6 = vector.load %arg4[%c0_5, %c0_6] : memref<16x128xf32, #tpu.memory_space<vmem>>, vector<16x128xf32>
    tpu.vector_store %arg4[%c0_5, %c0_6], %5 {strides = array<i32>} : memref<16x128xf32, #tpu.memory_space<vmem>>, vector<16x128xf32>,
    %7 = tpu.iota {dimensions = array<i32: 0>} : vector<16x128xi32>
    %c16_i32 = arith.constant 16 : i32
    %8 = arith.muli %arg0, %c16_i32 : i32
    %9 = vector.broadcast %8 : i32 to vector<16x128xi32>
    %10 = arith.addi %7, %9 : vector<16x128xi32>
    %c8_i32 = arith.constant 8 : i32
    %11 = vector.broadcast %c8_i32 : i32 to vector<16x128xi32>
    %12 = arith.cmpi slt, %10, %11 : vector<16x128xi32>
    %cst_7 = arith.constant 0.000000e+00 : f32
    %13 = vector.broadcast %cst_7 : f32 to vector<16x128xf32>
    %14 = arith.select %12, %5, %13 : vector<16x128xi1>, vector<16x128xf32>
    %cst_8 = arith.constant dense<0.000000e+00> : vector<128xf32>
    %15 = vector.multi_reduction <add>, %14, %cst_8 [0] : vector<16x128xf32> to vector<128xf32>
    %16 = vector.shape_cast %15 : vector<128xf32> to vector<1x128xf32>
    %17 = vector.shape_cast %16 : vector<1x128xf32> to vector<1x1x128xf32>
    %c0_9 = arith.constant 0 : index
    %c0_10 = arith.constant 0 : index
    %c0_11 = arith.constant 0 : index
    %18 = vector.load %arg5[%c0_9, %c0_10, %c0_11] : memref<1x1x128xf32, #tpu.memory_space<vmem>>, vector<1x1x128xf32>
    tpu.vector_store %arg5[%c0_9, %c0_10, %c0_11], %17 {strides = array<i32>} : memref<1x1x128xf32, #tpu.memory_space<vmem>>, vector<1x1x128xf32>,
    %19 = arith.mulf %14, %14 : vector<16x128xf32>
    %cst_12 = arith.constant dense<0.000000e+00> : vector<128xf32>
    %20 = vector.multi_reduction <add>, %19, %cst_12 [0] : vector<16x128xf32> to vector<128xf32>
    %21 = vector.shape_cast %20 : vector<128xf32> to vector<1x128xf32>
    %22 = vector.shape_cast %21 : vector<1x128xf32> to vector<1x1x128xf32>
    %c0_13 = arith.constant 0 : index
    %c0_14 = arith.constant 0 : index
    %c0_15 = arith.constant 0 : index
    %23 = vector.load %arg6[%c0_13, %c0_14, %c0_15] : memref<1x1x128xf32, #tpu.memory_space<vmem>>, vector<1x1x128xf32>
    tpu.vector_store %arg6[%c0_13, %c0_14, %c0_15], %22 {strides = array<i32>} : memref<1x1x128xf32, #tpu.memory_space<vmem>>, vector<1x1x128xf32>,
    return
  }
  func.func @transform_0(%arg0: i32) -> (i32, i32) {
    %c0_i32 = arith.constant 0 : i32
    %c0_i32_0 = arith.constant 0 : i32
    return %arg0, %c0_i32 : i32, i32
  }
  func.func @transform_1(%arg0: i32) -> (i32, i32) {
    %c0_i32 = arith.constant 0 : i32
    %c0_i32_0 = arith.constant 0 : i32
    %c0_i32_1 = arith.constant 0 : i32
    return %c0_i32, %c0_i32_0 : i32, i32
  }
  func.func @transform_2(%arg0: i32) -> (i32, i32) {
    %c0_i32 = arith.constant 0 : i32
    %c0_i32_0 = arith.constant 0 : i32
    %c0_i32_1 = arith.constant 0 : i32
    return %c0_i32, %c0_i32_0 : i32, i32
  }
  func.func @transform_3(%arg0: i32) -> (i32, i32) {
    %c0_i32 = arith.constant 0 : i32
    %c0_i32_0 = arith.constant 0 : i32
    return %arg0, %c0_i32 : i32, i32
  }
  func.func @transform_4(%arg0: i32) -> (i32, i32, i32) {
    %c0_i32 = arith.constant 0 : i32
    %c0_i32_0 = arith.constant 0 : i32
    %c0_i32_1 = arith.constant 0 : i32
    return %arg0, %c0_i32, %c0_i32_0 : i32, i32, i32
  }
  func.func @transform_5(%arg0: i32) -> (i32, i32, i32) {
    %c0_i32 = arith.constant 0 : i32
    %c0_i32_0 = arith.constant 0 : i32
    %c0_i32_1 = arith.constant 0 : i32
    return %arg0, %c0_i32, %c0_i32_0 : i32, i32, i32
  }
}

</mosaic_0001>

<llo_original>
// kernel: tpu_custom_call.1
$region0: #{tpu_custom_call.1}
  #allocation0 [shape = 'u32[]', space=smem, size = 0x4, offset = 0x4, fixed_abs, tag = 'smem constant byte address 0x4 - core index']
  #allocation1 [shape = 'u32[72,128]{1,0:T(1,128)}', space=vmem, size = 0x9000, scoped, tag = 'internal scratch']
  %s0 = inlined_call_operand.hbm [shape: bf16[16,896], index: 0, kind: input, shape index: {}]
  %s1 = inlined_call_operand.hbm [shape: bf16[896,128], index: 1, kind: input, shape index: {}]
  %s2 = inlined_call_operand.vmem [shape: f32[1,128], index: 2, kind: input, shape index: {}]
  %s3 = inlined_call_operand.hbm [shape: f32[16,128], index: 3, kind: output, shape index: {0}]
  %s4 = inlined_call_operand.hbm [shape: f32[1,1,128], index: 4, kind: output, shape index: {1}]
  %s5 = inlined_call_operand.hbm [shape: f32[1,1,128], index: 5, kind: output, shape index: {2}]
  %6 = xla_tuple %s3, %s4, %s5
  %s7 = sld [smem:[#allocation0]]
  $region46: #{tpu_custom_call.1} parent=0
    _
  %s9 = ssub.s32 1, %s7
  %s10 = scalar_select 0, %s9, %s7
  $region1: #{tpu_custom_call.1} parent=0
    #allocation2 [shape = 'u8[28672]{0}', space=vmem, size = 0x7000, scoped, tag = 'input window, operand 0, single buffered']
    #allocation3 [shape = 's32[1]{0}', space=sflag, size = 0x4, scoped, tag = 'scoped memory for tpu_custom_call.1']
    #allocation4 [shape = 's32[1]{0}', space=sflag, size = 0x4, scoped, tag = 'scoped memory for tpu_custom_call.1']
    #allocation5 [shape = 'u8[229376]{0}', space=vmem, size = 0x38000, scoped, tag = 'input window, operand 1, single buffered']
    #allocation6 [shape = 's32[1]{0}', space=sflag, size = 0x4, scoped, tag = 'scoped memory for tpu_custom_call.1']
    #allocation7 [shape = 'u8[8192]{0}', space=vmem, size = 0x2000, scoped, tag = 'output window, operand 0, single buffered']
    #allocation8 [shape = 'u8[512]{0}', space=vmem, size = 0x400, scoped, tag = 'output window, operand 1, single buffered']
    #allocation9 [shape = 's32[1]{0}', space=sflag, size = 0x4, scoped, tag = 'scoped memory for tpu_custom_call.1']
    #allocation10 [shape = 'u8[512]{0}', space=vmem, size = 0x400, scoped, tag = 'output window, operand 2, single buffered']
    %11 = vsyncpa [#allocation3], 0
    %12 = vsyncpa [#allocation6], 0
    %13 = vsyncpa [#allocation4], 0
    %14 = vsyncpa [#allocation9], 0
    // Predicated region
    $region2: #{tpu_custom_call.1} parent=1 // pred_check
      _
    $region3: #{tpu_custom_call.1} parent=1 // pred_check_branch
      %16 = sbr.rel (0) target = $region5
    $region4: #{tpu_custom_call.1} parent=1 // pred_region
      %18 = vsyncadd [#allocation3], 0
      %s19 = sshll.u32 %s0, 4
      %s20 = int_to_ptr.hbm [resolvable:$true] %s19
      %s21 = sshll.u32 [#allocation2], 4
      %s22 = int_to_ptr.vmem [resolvable:$true] %s21
      %27 = dma.hbm_to_vmem [thread:$0]  %s20, 896, %s22, [#allocation3], 448, 448, 28
    $region5: #{tpu_custom_call.1} parent=1 // pred_fallthru
      _
    // Predicated region
    $region6: #{tpu_custom_call.1} parent=1 // pred_check
      _
    $region7: #{tpu_custom_call.1} parent=1 // pred_check_branch
      %29 = sbr.rel (0) target = $region9
    $region8: #{tpu_custom_call.1} parent=1 // pred_region
      %31 = vsyncadd [#allocation6], 0
      %s32 = sshll.u32 %s1, 4
      %s33 = int_to_ptr.hbm [resolvable:$true] %s32
      %s34 = sshll.u32 [#allocation5], 4
      %s35 = int_to_ptr.vmem [resolvable:$true] %s34
      %40 = dma.hbm_to_vmem [thread:$0]  %s33, 7168, %s35, [#allocation6], 64, 64, 4
    $region9: #{tpu_custom_call.1} parent=1 // pred_fallthru
      _
    // Predicated region
    $region10: #{tpu_custom_call.1} parent=1 // pred_check
      _
    $region11: #{tpu_custom_call.1} parent=1 // pred_check_branch
      %42 = sbr.rel (0) target = $region13
    $region12: #{tpu_custom_call.1} parent=1 // pred_region
      _
    $region13: #{tpu_custom_call.1} parent=1 // pred_fallthru
      _
    // Predicated region
    $region14: #{tpu_custom_call.1} parent=1 // pred_check
      _
    $region15: #{tpu_custom_call.1} parent=1 // pred_check_branch
      %44 = sbr.rel (0) target = $region17
    $region16: #{tpu_custom_call.1} parent=1 // pred_region
      %46 = dma.done [#allocation3], 896
    $region17: #{tpu_custom_call.1} parent=1 // pred_fallthru
      _
    // Predicated region
    $region18: #{tpu_custom_call.1} parent=1 // pred_check
      _
    $region19: #{tpu_custom_call.1} parent=1 // pred_check_branch
      %48 = sbr.rel (0) target = $region21
    $region20: #{tpu_custom_call.1} parent=1 // pred_region
      %50 = dma.done [#allocation6], 7168
    $region21: #{tpu_custom_call.1} parent=1 // pred_fallthru
      _
    %v51 = vld [vmem:[#allocation2] sm:$0xff]
    %v52 = vld [vmem:[#allocation2 + $0x8] sm:$0xff]
    %v53 = vld [vmem:[#allocation2 + $0x10] sm:$0xff]
    %v54 = vld [vmem:[#allocation2 + $0x18] sm:$0xf]
    %v55 = vld [vmem:[#allocation2 + $0x1c] sm:$0xff]
    %v56 = vld [vmem:[#allocation2 + $0x24] sm:$0xff]
    %v57 = vld [vmem:[#allocation2 + $0x2c] sm:$0xff]
    %v58 = vld [vmem:[#allocation2 + $0x34] sm:$0xf]
    %v59 = vld [vmem:[#allocation5] sm:$0xf]
    %v60 = vld [vmem:[#allocation5 + $0x4] sm:$0xf]
    %v61 = vld [vmem:[#allocation5 + $0x8] sm:$0xf]
    %v62 = vld [vmem:[#allocation5 + $0xc] sm:$0xf]
    %v63 = vld [vmem:[#allocation5 + $0x10] sm:$0xf]
    %v64 = vld [vmem:[#allocation5 + $0x14] sm:$0xf]
    %v65 = vld [vmem:[#allocation5 + $0x18] sm:$0xf]
    %v66 = vld [vmem:[#allocation5 + $0x1c] sm:$0xf]
    %v67 = vld [vmem:[#allocation5 + $0x20] sm:$0xf]
    %v68 = vld [vmem:[#allocation5 + $0x24] sm:$0xf]
    %v69 = vld [vmem:[#allocation5 + $0x28] sm:$0xf]
    %v70 = vld [vmem:[#allocation5 + $0x2c] sm:$0xf]
    %v71 = vld [vmem:[#allocation5 + $0x30] sm:$0xf]
    %v72 = vld [vmem:[#allocation5 + $0x34] sm:$0xf]
    %v73 = vld [vmem:[#allocation5 + $0x38] sm:$0xf]
    %v74 = vld [vmem:[#allocation5 + $0x3c] sm:$0xf]
    %v75 = vld [vmem:[#allocation5 + $0x40] sm:$0xf]
    %v76 = vld [vmem:[#allocation5 + $0x44] sm:$0xf]
    %v77 = vld [vmem:[#allocation5 + $0x48] sm:$0xf]
    %v78 = vld [vmem:[#allocation5 + $0x4c] sm:$0xf]
    %v79 = vld [vmem:[#allocation5 + $0x50] sm:$0xf]
    %v80 = vld [vmem:[#allocation5 + $0x54] sm:$0xf]
    %v81 = vld [vmem:[#allocation5 + $0x58] sm:$0xf]
    %v82 = vld [vmem:[#allocation5 + $0x5c] sm:$0xf]
    %v83 = vld [vmem:[#allocation5 + $0x60] sm:$0xf]
    %v84 = vld [vmem:[#allocation5 + $0x64] sm:$0xf]
    %v85 = vld [vmem:[#allocation5 + $0x68] sm:$0xf]
    %v86 = vld [vmem:[#allocation5 + $0x6c] sm:$0xf]
    %v87 = vld [vmem:[#allocation5 + $0x70] sm:$0xf]
    %v88 = vld [vmem:[#allocation5 + $0x74] sm:$0xf]
    %v89 = vld [vmem:[#allocation5 + $0x78] sm:$0xf]
    %v90 = vld [vmem:[#allocation5 + $0x7c] sm:$0xf]
    %v91 = vld [vmem:[#allocation5 + $0x80] sm:$0xf]
    %v92 = vld [vmem:[#allocation5 + $0x84] sm:$0xf]
    %v93 = vld [vmem:[#allocation5 + $0x88] sm:$0xf]
    %v94 = vld [vmem:[#allocation5 + $0x8c] sm:$0xf]
    %v95 = vld [vmem:[#allocation5 + $0x90] sm:$0xf]
    %v96 = vld [vmem:[#allocation5 + $0x94] sm:$0xf]
    %v97 = vld [vmem:[#allocation5 + $0x98] sm:$0xf]
    %v98 = vld [vmem:[#allocation5 + $0x9c] sm:$0xf]
    %v99 = vld [vmem:[#allocation5 + $0xa0] sm:$0xf]
    %v100 = vld [vmem:[#allocation5 + $0xa4] sm:$0xf]
    %v101 = vld [vmem:[#allocation5 + $0xa8] sm:$0xf]
    %v102 = vld [vmem:[#allocation5 + $0xac] sm:$0xf]
    %v103 = vld [vmem:[#allocation5 + $0xb0] sm:$0xf]
    %v104 = vld [vmem:[#allocation5 + $0xb4] sm:$0xf]
    %v105 = vld [vmem:[#allocation5 + $0xb8] sm:$0xf]
    %v106 = vld [vmem:[#allocation5 + $0xbc] sm:$0xf]
    %v107 = vld [vmem:[#allocation5 + $0xc0] sm:$0xf]
    %v108 = vld [vmem:[#allocation5 + $0xc4] sm:$0xf]
    %v109 = vld [vmem:[#allocation5 + $0xc8] sm:$0xf]
    %v110 = vld [vmem:[#allocation5 + $0xcc] sm:$0xf]
    %v111 = vld [vmem:[#allocation5 + $0xd0] sm:$0xf]
    %v112 = vld [vmem:[#allocation5 + $0xd4] sm:$0xf]
    %v113 = vld [vmem:[#allocation5 + $0xd8] sm:$0xf]
    %v114 = vld [vmem:[#allocation5 + $0xdc] sm:$0xf]
    %v115 = vld [vmem:[#allocation5 + $0xe0] sm:$0xf]
    %v116 = vld [vmem:[#allocation5 + $0xe4] sm:$0xf]
    %v117 = vld [vmem:[#allocation5 + $0xe8] sm:$0xf]
    %v118 = vld [vmem:[#allocation5 + $0xec] sm:$0xf]
    %v119 = vld [vmem:[#allocation5 + $0xf0] sm:$0xf]
    %v120 = vld [vmem:[#allocation5 + $0xf4] sm:$0xf]
    %v121 = vld [vmem:[#allocation5 + $0xf8] sm:$0xf]
    %v122 = vld [vmem:[#allocation5 + $0xfc] sm:$0xf]
    %v123 = vld [vmem:[#allocation5 + $0x100] sm:$0xf]
    %v124 = vld [vmem:[#allocation5 + $0x104] sm:$0xf]
    %v125 = vld [vmem:[#allocation5 + $0x108] sm:$0xf]
    %v126 = vld [vmem:[#allocation5 + $0x10c] sm:$0xf]
    %v127 = vld [vmem:[#allocation5 + $0x110] sm:$0xf]
    %v128 = vld [vmem:[#allocation5 + $0x114] sm:$0xf]
    %v129 = vld [vmem:[#allocation5 + $0x118] sm:$0xf]
    %v130 = vld [vmem:[#allocation5 + $0x11c] sm:$0xf]
    %v131 = vld [vmem:[#allocation5 + $0x120] sm:$0xf]
    %v132 = vld [vmem:[#allocation5 + $0x124] sm:$0xf]
    %v133 = vld [vmem:[#allocation5 + $0x128] sm:$0xf]
    %v134 = vld [vmem:[#allocation5 + $0x12c] sm:$0xf]
    %v135 = vld [vmem:[#allocation5 + $0x130] sm:$0xf]
    %v136 = vld [vmem:[#allocation5 + $0x134] sm:$0xf]
    %v137 = vld [vmem:[#allocation5 + $0x138] sm:$0xf]
    %v138 = vld [vmem:[#allocation5 + $0x13c] sm:$0xf]
    %v139 = vld [vmem:[#allocation5 + $0x140] sm:$0xf]
    %v140 = vld [vmem:[#allocation5 + $0x144] sm:$0xf]
    %v141 = vld [vmem:[#allocation5 + $0x148] sm:$0xf]
    %v142 = vld [vmem:[#allocation5 + $0x14c] sm:$0xf]
    %v143 = vld [vmem:[#allocation5 + $0x150] sm:$0xf]
    %v144 = vld [vmem:[#allocation5 + $0x154] sm:$0xf]
    %v145 = vld [vmem:[#allocation5 + $0x158] sm:$0xf]
    %v146 = vld [vmem:[#allocation5 + $0x15c] sm:$0xf]
    %v147 = vld [vmem:[#allocation5 + $0x160] sm:$0xf]
    %v148 = vld [vmem:[#allocation5 + $0x164] sm:$0xf]
    %v149 = vld [vmem:[#allocation5 + $0x168] sm:$0xf]
    %v150 = vld [vmem:[#allocation5 + $0x16c] sm:$0xf]
    %v151 = vld [vmem:[#allocation5 + $0x170] sm:$0xf]
    %v152 = vld [vmem:[#allocation5 + $0x174] sm:$0xf]
    %v153 = vld [vmem:[#allocation5 + $0x178] sm:$0xf]
    %v154 = vld [vmem:[#allocation5 + $0x17c] sm:$0xf]
    %v155 = vld [vmem:[#allocation5 + $0x180] sm:$0xf]
    %v156 = vld [vmem:[#allocation5 + $0x184] sm:$0xf]
    %v157 = vld [vmem:[#allocation5 + $0x188] sm:$0xf]
    %v158 = vld [vmem:[#allocation5 + $0x18c] sm:$0xf]
    %v159 = vld [vmem:[#allocation5 + $0x190] sm:$0xf]
    %v160 = vld [vmem:[#allocation5 + $0x194] sm:$0xf]
    %v161 = vld [vmem:[#allocation5 + $0x198] sm:$0xf]
    %v162 = vld [vmem:[#allocation5 + $0x19c] sm:$0xf]
    %v163 = vld [vmem:[#allocation5 + $0x1a0] sm:$0xf]
    %v164 = vld [vmem:[#allocation5 + $0x1a4] sm:$0xf]
    %v165 = vld [vmem:[#allocation5 + $0x1a8] sm:$0xf]
    %v166 = vld [vmem:[#allocation5 + $0x1ac] sm:$0xf]
    %v167 = vld [vmem:[#allocation5 + $0x1b0] sm:$0xf]
    %v168 = vld [vmem:[#allocation5 + $0x1b4] sm:$0xf]
    %v169 = vld [vmem:[#allocation5 + $0x1b8] sm:$0xf]
    %v170 = vld [vmem:[#allocation5 + $0x1bc] sm:$0xf]
    %v171 = vld [vmem:[%s2] sm:$0x1]
    %v173 = vperm.slane %v171, 0
    %v183 = vunpack.c.l.b16 %v51
    %v184 = vunpack.c.h.b16 %v51
    %v185 = vunpack.c.l.b16 %v52
    %v186 = vunpack.c.h.b16 %v52
    %v187 = vunpack.c.l.b16 %v53
    %v188 = vunpack.c.h.b16 %v53
    %v189 = vunpack.c.l.b16 %v54
    %v190 = vunpack.c.l.b16 %v55
    %v191 = vunpack.c.h.b16 %v55
    %v192 = vunpack.c.l.b16 %v56
    %v193 = vunpack.c.h.b16 %v56
    %v194 = vunpack.c.l.b16 %v57
    %v195 = vunpack.c.h.b16 %v57
    %v196 = vunpack.c.l.b16 %v58
    %v197 = vpack.c.b16 %v190, %v183
    %v198 = vpack.c.b16 %v191, %v184
    %v199 = vpack.c.b16 %v192, %v185
    %v200 = vpack.c.b16 %v193, %v186
    %v201 = vpack.c.b16 %v194, %v187
    %v202 = vpack.c.b16 %v195, %v188
    %v203 = vpack.c.b16 %v196, %v189
    %v323 = vunpack.c.l.b16 %v59
    %v324 = vunpack.c.l.b16 %v60
    %v325 = vunpack.c.l.b16 %v61
    %v326 = vunpack.c.l.b16 %v62
    %v327 = vunpack.c.l.b16 %v63
    %v328 = vunpack.c.l.b16 %v64
    %v329 = vunpack.c.l.b16 %v65
    %v330 = vunpack.c.l.b16 %v66
    %v331 = vunpack.c.l.b16 %v67
    %v332 = vunpack.c.l.b16 %v68
    %v333 = vunpack.c.l.b16 %v69
    %v334 = vunpack.c.l.b16 %v70
    %v335 = vunpack.c.l.b16 %v71
    %v336 = vunpack.c.l.b16 %v72
    %v337 = vunpack.c.l.b16 %v73
    %v338 = vunpack.c.l.b16 %v74
    %v339 = vunpack.c.l.b16 %v75
    %v340 = vunpack.c.l.b16 %v76
    %v341 = vunpack.c.l.b16 %v77
    %v342 = vunpack.c.l.b16 %v78
    %v343 = vunpack.c.l.b16 %v79
    %v344 = vunpack.c.l.b16 %v80
    %v345 = vunpack.c.l.b16 %v81
    %v346 = vunpack.c.l.b16 %v82
    %v347 = vunpack.c.l.b16 %v83
    %v348 = vunpack.c.l.b16 %v84
    %v349 = vunpack.c.l.b16 %v85
    %v350 = vunpack.c.l.b16 %v86
    %v351 = vunpack.c.l.b16 %v87
    %v352 = vunpack.c.l.b16 %v88
    %v353 = vunpack.c.l.b16 %v89
    %v354 = vunpack.c.l.b16 %v90
    %v355 = vunpack.c.l.b16 %v91
    %v356 = vunpack.c.l.b16 %v92
    %v357 = vunpack.c.l.b16 %v93
    %v358 = vunpack.c.l.b16 %v94
    %v359 = vunpack.c.l.b16 %v95
    %v360 = vunpack.c.l.b16 %v96
    %v361 = vunpack.c.l.b16 %v97
    %v362 = vunpack.c.l.b16 %v98
    %v363 = vunpack.c.l.b16 %v99
    %v364 = vunpack.c.l.b16 %v100
    %v365 = vunpack.c.l.b16 %v101
    %v366 = vunpack.c.l.b16 %v102
    %v367 = vunpack.c.l.b16 %v103
    %v368 = vunpack.c.l.b16 %v104
    %v369 = vunpack.c.l.b16 %v105
    %v370 = vunpack.c.l.b16 %v106
    %v371 = vunpack.c.l.b16 %v107
    %v372 = vunpack.c.l.b16 %v108
    %v373 = vunpack.c.l.b16 %v109
    %v374 = vunpack.c.l.b16 %v110
    %v375 = vunpack.c.l.b16 %v111
    %v376 = vunpack.c.l.b16 %v112
    %v377 = vunpack.c.l.b16 %v113
    %v378 = vunpack.c.l.b16 %v114
    %v379 = vunpack.c.l.b16 %v115
    %v380 = vunpack.c.l.b16 %v116
    %v381 = vunpack.c.l.b16 %v117
    %v382 = vunpack.c.l.b16 %v118
    %v383 = vunpack.c.l.b16 %v119
    %v384 = vunpack.c.l.b16 %v120
    %v385 = vunpack.c.l.b16 %v121
    %v386 = vunpack.c.l.b16 %v122
    %v387 = vunpack.c.l.b16 %v123
    %v388 = vunpack.c.l.b16 %v124
    %v389 = vunpack.c.l.b16 %v125
    %v390 = vunpack.c.l.b16 %v126
    %v391 = vunpack.c.l.b16 %v127
    %v392 = vunpack.c.l.b16 %v128
    %v393 = vunpack.c.l.b16 %v129
    %v394 = vunpack.c.l.b16 %v130
    %v395 = vunpack.c.l.b16 %v131
    %v396 = vunpack.c.l.b16 %v132
    %v397 = vunpack.c.l.b16 %v133
    %v398 = vunpack.c.l.b16 %v134
    %v399 = vunpack.c.l.b16 %v135
    %v400 = vunpack.c.l.b16 %v136
    %v401 = vunpack.c.l.b16 %v137
    %v402 = vunpack.c.l.b16 %v138
    %v403 = vunpack.c.l.b16 %v139
    %v404 = vunpack.c.l.b16 %v140
    %v405 = vunpack.c.l.b16 %v141
    %v406 = vunpack.c.l.b16 %v142
    %v407 = vunpack.c.l.b16 %v143
    %v408 = vunpack.c.l.b16 %v144
    %v409 = vunpack.c.l.b16 %v145
    %v410 = vunpack.c.l.b16 %v146
    %v411 = vunpack.c.l.b16 %v147
    %v412 = vunpack.c.l.b16 %v148
    %v413 = vunpack.c.l.b16 %v149
    %v414 = vunpack.c.l.b16 %v150
    %v415 = vunpack.c.l.b16 %v151
    %v416 = vunpack.c.l.b16 %v152
    %v417 = vunpack.c.l.b16 %v153
    %v418 = vunpack.c.l.b16 %v154
    %v419 = vunpack.c.l.b16 %v155
    %v420 = vunpack.c.l.b16 %v156
    %v421 = vunpack.c.l.b16 %v157
    %v422 = vunpack.c.l.b16 %v158
    %v423 = vunpack.c.l.b16 %v159
    %v424 = vunpack.c.l.b16 %v160
    %v425 = vunpack.c.l.b16 %v161
    %v426 = vunpack.c.l.b16 %v162
    %v427 = vunpack.c.l.b16 %v163
    %v428 = vunpack.c.l.b16 %v164
    %v429 = vunpack.c.l.b16 %v165
    %v430 = vunpack.c.l.b16 %v166
    %v431 = vunpack.c.l.b16 %v167
    %v432 = vunpack.c.l.b16 %v168
    %v433 = vunpack.c.l.b16 %v169
    %v434 = vunpack.c.l.b16 %v170
    %v435 = vpack.c.b16 %v324, %v323
    %v436 = vpack.c.b16 %v326, %v325
    %v437 = vpack.c.b16 %v328, %v327
    %v438 = vpack.c.b16 %v330, %v329
    %v439 = vpack.c.b16 %v332, %v331
    %v440 = vpack.c.b16 %v334, %v333
    %v441 = vpack.c.b16 %v336, %v335
    %v442 = vpack.c.b16 %v338, %v337
    %v443 = vpack.c.b16 %v340, %v339
    %v444 = vpack.c.b16 %v342, %v341
    %v445 = vpack.c.b16 %v344, %v343
    %v446 = vpack.c.b16 %v346, %v345
    %v447 = vpack.c.b16 %v348, %v347
    %v448 = vpack.c.b16 %v350, %v349
    %v449 = vpack.c.b16 %v352, %v351
    %v450 = vpack.c.b16 %v354, %v353
    %v451 = vpack.c.b16 %v356, %v355
    %v452 = vpack.c.b16 %v358, %v357
    %v453 = vpack.c.b16 %v360, %v359
    %v454 = vpack.c.b16 %v362, %v361
    %v455 = vpack.c.b16 %v364, %v363
    %v456 = vpack.c.b16 %v366, %v365
    %v457 = vpack.c.b16 %v368, %v367
    %v458 = vpack.c.b16 %v370, %v369
    %v459 = vpack.c.b16 %v372, %v371
    %v460 = vpack.c.b16 %v374, %v373
    %v461 = vpack.c.b16 %v376, %v375
    %v462 = vpack.c.b16 %v378, %v377
    %v463 = vpack.c.b16 %v380, %v379
    %v464 = vpack.c.b16 %v382, %v381
    %v465 = vpack.c.b16 %v384, %v383
    %v466 = vpack.c.b16 %v386, %v385
    %v467 = vpack.c.b16 %v388, %v387
    %v468 = vpack.c.b16 %v390, %v389
    %v469 = vpack.c.b16 %v392, %v391
    %v470 = vpack.c.b16 %v394, %v393
    %v471 = vpack.c.b16 %v396, %v395
    %v472 = vpack.c.b16 %v398, %v397
    %v473 = vpack.c.b16 %v400, %v399
    %v474 = vpack.c.b16 %v402, %v401
    %v475 = vpack.c.b16 %v404, %v403
    %v476 = vpack.c.b16 %v406, %v405
    %v477 = vpack.c.b16 %v408, %v407
    %v478 = vpack.c.b16 %v410, %v409
    %v479 = vpack.c.b16 %v412, %v411
    %v480 = vpack.c.b16 %v414, %v413
    %v481 = vpack.c.b16 %v416, %v415
    %v482 = vpack.c.b16 %v418, %v417
    %v483 = vpack.c.b16 %v420, %v419
    %v484 = vpack.c.b16 %v422, %v421
    %v485 = vpack.c.b16 %v424, %v423
    %v486 = vpack.c.b16 %v426, %v425
    %v487 = vpack.c.b16 %v428, %v427
    %v488 = vpack.c.b16 %v430, %v429
    %v489 = vpack.c.b16 %v432, %v431
    %v490 = vpack.c.b16 %v434, %v433
    %547 = vmatpush.bf16.msra.mxu0 %v442
    %548 = vmatpush.bf16.msra.mxu0 %v441
    %549 = vmatpush.bf16.msra.mxu0 %v440
    %550 = vmatpush.bf16.msra.mxu0 %v439
    %551 = vmatpush.bf16.msra.mxu0 %v438
    %552 = vmatpush.bf16.msra.mxu0 %v437
    %553 = vmatpush.bf16.msra.mxu0 %v436
    %554 = vmatpush.bf16.msra.mxu0 %v435
    %555 = vmatmul.bf16.gmra.mxu0 %v197
    %v556 = vpop.f32.mrf.mxu0
    %v557 = vadd.f32 %v173, %v556
    %v558 = vpop.f32.mrf.mxu0
    %v559 = vadd.f32 %v173, %v558
    %560 = vdwg.mxu0
    %561 = vmatpush.bf16.msra.mxu0 %v450
    %562 = vmatpush.bf16.msra.mxu0 %v449
    %563 = vmatpush.bf16.msra.mxu0 %v448
    %564 = vmatpush.bf16.msra.mxu0 %v447
    %565 = vmatpush.bf16.msra.mxu0 %v446
    %566 = vmatpush.bf16.msra.mxu0 %v445
    %567 = vmatpush.bf16.msra.mxu0 %v444
    %568 = vmatpush.bf16.msra.mxu0 %v443
    %569 = vmatmul.bf16.gmra.mxu0 %v198
    %v570 = vpop.f32.mrf.mxu0
    %v571 = vadd.f32 %v557, %v570
    %v572 = vpop.f32.mrf.mxu0
    %v573 = vadd.f32 %v559, %v572
    %574 = vdwg.mxu0
    %575 = vmatpush.bf16.msra.mxu0 %v458
    %576 = vmatpush.bf16.msra.mxu0 %v457
    %577 = vmatpush.bf16.msra.mxu0 %v456
    %578 = vmatpush.bf16.msra.mxu0 %v455
    %579 = vmatpush.bf16.msra.mxu0 %v454
    %580 = vmatpush.bf16.msra.mxu0 %v453
    %581 = vmatpush.bf16.msra.mxu0 %v452
    %582 = vmatpush.bf16.msra.mxu0 %v451
    %583 = vmatmul.bf16.gmra.mxu0 %v199
    %v584 = vpop.f32.mrf.mxu0
    %v585 = vadd.f32 %v571, %v584
    %v586 = vpop.f32.mrf.mxu0
    %v587 = vadd.f32 %v573, %v586
    %588 = vdwg.mxu0
    %589 = vmatpush.bf16.msra.mxu0 %v466
    %590 = vmatpush.bf16.msra.mxu0 %v465
    %591 = vmatpush.bf16.msra.mxu0 %v464
    %592 = vmatpush.bf16.msra.mxu0 %v463
    %593 = vmatpush.bf16.msra.mxu0 %v462
    %594 = vmatpush.bf16.msra.mxu0 %v461
    %595 = vmatpush.bf16.msra.mxu0 %v460
    %596 = vmatpush.bf16.msra.mxu0 %v459
    %597 = vmatmul.bf16.gmra.mxu0 %v200
    %v598 = vpop.f32.mrf.mxu0
    %v599 = vadd.f32 %v585, %v598
    %v600 = vpop.f32.mrf.mxu0
    %v601 = vadd.f32 %v587, %v600
    %602 = vdwg.mxu0
    %603 = vmatpush.bf16.msra.mxu0 %v474
    %604 = vmatpush.bf16.msra.mxu0 %v473
    %605 = vmatpush.bf16.msra.mxu0 %v472
    %606 = vmatpush.bf16.msra.mxu0 %v471
    %607 = vmatpush.bf16.msra.mxu0 %v470
    %608 = vmatpush.bf16.msra.mxu0 %v469
    %609 = vmatpush.bf16.msra.mxu0 %v468
    %610 = vmatpush.bf16.msra.mxu0 %v467
    %611 = vmatmul.bf16.gmra.mxu0 %v201
    %v612 = vpop.f32.mrf.mxu0
    %v613 = vadd.f32 %v599, %v612
    %v614 = vpop.f32.mrf.mxu0
    %v615 = vadd.f32 %v601, %v614
    %616 = vdwg.mxu0
    %617 = vmatpush.bf16.msra.mxu0 %v482
    %618 = vmatpush.bf16.msra.mxu0 %v481
    %619 = vmatpush.bf16.msra.mxu0 %v480
    %620 = vmatpush.bf16.msra.mxu0 %v479
    %621 = vmatpush.bf16.msra.mxu0 %v478
    %622 = vmatpush.bf16.msra.mxu0 %v477
    %623 = vmatpush.bf16.msra.mxu0 %v476
    %624 = vmatpush.bf16.msra.mxu0 %v475
    %625 = vmatmul.bf16.gmra.mxu0 %v202
    %v626 = vpop.f32.mrf.mxu0
    %v627 = vadd.f32 %v613, %v626
    %v628 = vpop.f32.mrf.mxu0
    %v629 = vadd.f32 %v615, %v628
    %630 = vdwg.mxu0
    %631 = vmatpush.bf16.msra.mxu0 %v490
    %632 = vmatpush.bf16.msra.mxu0 %v489
    %633 = vmatpush.bf16.msra.mxu0 %v488
    %634 = vmatpush.bf16.msra.mxu0 %v487
    %635 = vmatpush.bf16.msra.mxu0 %v486
    %636 = vmatpush.bf16.msra.mxu0 %v485
    %637 = vmatpush.bf16.msra.mxu0 %v484
    %638 = vmatpush.bf16.msra.mxu0 %v483
    %639 = vmatmul.bf16.gmra.mxu0 %v203
    %v640 = vpop.f32.mrf.mxu0
    %v641 = vadd.f32 %v627, %v640
    %v642 = vpop.f32.mrf.mxu0
    %v643 = vadd.f32 %v629, %v642
    %644 = vdwg.mxu0
    %645 = vst [vmem:[#allocation7] sm:$0xff] %v641
    %646 = vst [vmem:[#allocation7 + $0x8] sm:$0xff] %v643
    %v647 = vlaneseq
    %v648 = vshrl.u32 %v647, 7
    %v649 = vadd.s32 %v648, 8
    %s650 = smul.u32 0, 16
    %v651 = vstv %s650
    %v652 = vadd.s32 %v648, %v651
    %v653 = vadd.s32 %v649, %v651
    %vm654 = vcmp.lt.s32.totalorder %v652, 8
    %vm655 = vcmp.lt.s32.totalorder %v653, 8
    %v656 = vsel %vm654, %v641, 0.0
    %v657 = vsel %vm655, %v643, 0.0
    %v658 = vadd.f32 %v656, %v657
    %v659 = vrot.slane %v658, 4
    %v660 = vadd.f32 %v658, %v659
    %v661 = vrot.slane %v660, 2
    %v662 = vadd.f32 %v660, %v661
    %v663 = vrot.slane %v662, 1
    %v664 = vadd.f32 %v662, %v663
    %665 = vst [vmem:[#allocation8] sm:$0x1] %v664
    %v666 = vmul.f32 %v656, %v656
    %v667 = vmul.f32 %v657, %v657
    %v668 = vadd.f32 %v666, %v667
    %v669 = vrot.slane %v668, 4
    %v670 = vadd.f32 %v668, %v669
    %v671 = vrot.slane %v670, 2
    %v672 = vadd.f32 %v670, %v671
    %v673 = vrot.slane %v672, 1
    %v674 = vadd.f32 %v672, %v673
    %675 = vst [vmem:[#allocation10] sm:$0x1] %v674
    // Predicated region
    $region22: #{tpu_custom_call.1} parent=1 // pred_check
      _
    $region23: #{tpu_custom_call.1} parent=1 // pred_check_branch
      %677 = sbr.rel (0) target = $region25
    $region24: #{tpu_custom_call.1} parent=1 // pred_region
      %679 = vsyncadd [#allocation4], 0
      %s680 = sshll.u32 [#allocation7], 4
      %s681 = int_to_ptr.vmem [resolvable:$true] %s680
      %s682 = sshll.u32 %s3, 4
      %s683 = int_to_ptr.hbm [resolvable:$true] %s682
      %688 = dma.vmem_to_hbm [thread:$0]  %s681, 256, %s683, [#allocation4], 128, 128, 8
    $region25: #{tpu_custom_call.1} parent=1 // pred_fallthru
      _
    // Predicated region
    $region26: #{tpu_custom_call.1} parent=1 // pred_check
      _
    $region27: #{tpu_custom_call.1} parent=1 // pred_check_branch
      %690 = sbr.rel (0) target = $region29
    $region28: #{tpu_custom_call.1} parent=1 // pred_region
      %692 = vsyncadd [#allocation9], 0
      %s694 = sshll.u32 [#allocation8], 4
      %s695 = int_to_ptr.vmem [resolvable:$true] %s694
      %s696 = sshll.u32 %s4, 4
      %s697 = int_to_ptr.hbm [resolvable:$true] %s696
      %699 = dma.vmem_to_hbm [thread:$0]  %s695, 16, %s697, [#allocation9]
    $region29: #{tpu_custom_call.1} parent=1 // pred_fallthru
      _
    // Predicated region
    $region30: #{tpu_custom_call.1} parent=1 // pred_check
      _
    $region31: #{tpu_custom_call.1} parent=1 // pred_check_branch
      %701 = sbr.rel (0) target = $region33
    $region32: #{tpu_custom_call.1} parent=1 // pred_region
      %703 = vsyncadd [#allocation9], 0
      %s705 = sshll.u32 [#allocation10], 4
      %s706 = int_to_ptr.vmem [resolvable:$true] %s705
      %s707 = sshll.u32 %s5, 4
      %s708 = int_to_ptr.hbm [resolvable:$true] %s707
      %710 = dma.vmem_to_hbm [thread:$0]  %s706, 16, %s708, [#allocation9]
    $region33: #{tpu_custom_call.1} parent=1 // pred_fallthru
      _
    // Predicated region
    $region34: #{tpu_custom_call.1} parent=1 // pred_check
      _
    $region35: #{tpu_custom_call.1} parent=1 // pred_check_branch
      %712 = sbr.rel (0) target = $region37
    $region36: #{tpu_custom_call.1} parent=1 // pred_region
      %714 = dma.done [#allocation4], 256
    $region37: #{tpu_custom_call.1} parent=1 // pred_fallthru
      _
    // Predicated region
    $region38: #{tpu_custom_call.1} parent=1 // pred_check
      _
    $region39: #{tpu_custom_call.1} parent=1 // pred_check_branch
      %716 = sbr.rel (0) target = $region41
    $region40: #{tpu_custom_call.1} parent=1 // pred_region
      %718 = dma.done [#allocation9], 16
    $region41: #{tpu_custom_call.1} parent=1 // pred_fallthru
      _
    // Predicated region
    $region42: #{tpu_custom_call.1} parent=1 // pred_check
      _
    $region43: #{tpu_custom_call.1} parent=1 // pred_check_branch
      %720 = sbr.rel (0) target = $region45
    $region44: #{tpu_custom_call.1} parent=1 // pred_region
      %722 = dma.done [#allocation9], 16
    $region45: #{tpu_custom_call.1} parent=1 // pred_fallthru
      _
    %723 = vsyncpa [#allocation3], 1
    %724 = vsyncpa [#allocation6], 1
    %725 = vsyncpa [#allocation4], 1
    %726 = vsyncpa [#allocation9], 1

</llo_original>
